<compile_context>
chip_gen: v7x
topology: tpu7x:2x2x1
jax: 0.10.0
libtpu: 0.0.40
codegen_flags: <defaults>
</compile_context>

<pallas_src>
import jax
import jax.numpy as jnp
from jax.experimental import pallas as pl
from jax.experimental.pallas import tpu as pltpu


def mtlr_kernel(x_ref, wg_ref, bg_ref, o_ref):
    # One MXU GEMM per batch tile (f32 accumulation) + broadcast f32 bias add.
    acc = jnp.dot(x_ref[...], wg_ref[...], preferred_element_type=jnp.float32)
    o_ref[...] = (acc + bg_ref[...]).astype(o_ref.dtype)


def _choose_block_n(N, F, K, x_itemsize, wg_itemsize):
    """Pick a batch tile that amortizes per-step overhead but fits a
    conservative (v7x-safe) VMEM budget with double buffering."""
    budget = 24 << 20  # bytes; conservative vs. 32 MiB scoped / 64 MiB physical (v7x)
    denom = 2 * F * x_itemsize + 2 * K * 4          # double-buffered x tile + out tile
    resident = F * K * wg_itemsize + K * 4          # WG + bG stay resident
    tn = max(256, (budget - resident) // max(denom, 1))
    tn = max(256, (tn // 256) * 256)                # multiple of 256 (MXU-friendly M)
    return int(min(tn, 4096))


def mtlr_forward(x, weight, bias, G, *, block_n=None):
    """MTLR forward: x (N, F) -> time logits (N, K) with K = G.shape[1].

    weight: (F, K-1), bias: (K-1,), G: (K-1, K) lower-triangular ones buffer.
    x is streamed in its own dtype (pass bf16 x to halve streamed HBM bytes);
    accumulation and the bias add are always f32, output is f32.
    """
    N, F = x.shape
    K = G.shape[1]

    compute_dtype = x.dtype  # stream x as-is; no wrapper-side cast round trip
    x_itemsize = jnp.dtype(compute_dtype).itemsize

    # --- Fold the constant G and bias into the weight (done once per call in
    #     f32, tiny (F, K-1) x (K-1, K) work; algebraically identical to the
    #     reference (x @ W + b) @ G). ---
    WG = jnp.dot(weight.astype(jnp.float32), G.astype(jnp.float32))  # (F, K)
    bG = jnp.dot(bias.astype(jnp.float32), G.astype(jnp.float32))    # (K,)
    WG = WG.astype(compute_dtype)                                    # resident operand
    bG = bG.reshape(1, K).astype(jnp.float32)                        # f32 bias add
    wg_itemsize = jnp.dtype(compute_dtype).itemsize

    # --- Batch tiling: single full block for small N, otherwise a large tile
    #     derived from the VMEM budget (partial last block handled by Pallas). ---
    if block_n is None:
        block_n = _choose_block_n(N, F, K, x_itemsize, wg_itemsize)
    tn = N if N <= block_n else block_n
    grid_n = pl.cdiv(N, tn)

    # --- Explicit VMEM limit so the larger tile compiles on every generation:
    #     2x x tile (double buffer) + 2x out tile + resident WG/bG + headroom. ---
    vmem_need = 2 * tn * F * x_itemsize + 2 * tn * K * 4 + F * K * wg_itemsize + K * 4
    vmem_limit = int(min(max(int(vmem_need * 1.5) + (1 << 20), 8 << 20), 64 << 20))

    # Advisory cost (unpadded K, real streamed/written bytes).
    cost = pl.CostEstimate(
        flops=2 * N * F * K,
        transcendentals=0,
        bytes_accessed=N * F * x_itemsize + F * K * wg_itemsize + K * 4 + N * K * 4,
    )

    out = pl.pallas_call(
        mtlr_kernel,
        out_shape=jax.ShapeDtypeStruct((N, K), jnp.float32),
        grid_spec=pltpu.PrefetchScalarGridSpec(
            num_scalar_prefetch=0,
            grid=(grid_n,),
            in_specs=[
                pl.BlockSpec((tn, F), lambda i: (i, 0)),   # streamed x tile
                pl.BlockSpec((F, K), lambda i: (0, 0)),    # resident folded weight
                pl.BlockSpec((1, K), lambda i: (0, 0)),    # resident folded bias
            ],
            out_specs=pl.BlockSpec((tn, K), lambda i: (i, 0)),  # unpadded, last dim == K
        ),
        compiler_params=pltpu.CompilerParams(
            dimension_semantics=("parallel",),
            vmem_limit_bytes=vmem_limit,
        ),
        cost_estimate=cost,
    )(x, WG, bG)

    return out


def init_mtlr_params(key, in_features, num_time_bins):
    """Deterministic init matching torchmtlr.MTLR.reset_parameters.

    In the torch module self.num_time_bins = num_time_bins + 1, so:
      mtlr_weight: xavier_normal_, shape (in_features, num_time_bins)
      mtlr_bias:   zeros,          shape (num_time_bins,)
      G (buffer):  tril(ones(num_time_bins, num_time_bins + 1))
    """
    Km1 = num_time_bins
    K = num_time_bins + 1
    std = (2.0 / (in_features + Km1)) ** 0.5  # xavier_normal, gain=1
    weight = std * jax.random.normal(key, (in_features, Km1), dtype=jnp.float32)
    bias = jnp.zeros((Km1,), dtype=jnp.float32)
    G = jnp.tril(jnp.ones((Km1, K), dtype=jnp.float32))
    return weight, bias, G


if __name__ == "__main__":
    key = jax.random.PRNGKey(0)
    k_x, k_w, k_x2 = jax.random.split(key, 3)

    batch = 4
    in_features = 32
    num_time_bins = 8  # module produces num_time_bins + 1 = 9 logits

    x = jax.random.normal(k_x, (batch, in_features), dtype=jnp.float32)
    weight, bias, G = init_mtlr_params(k_w, in_features, num_time_bins)
    ref = (x @ weight + bias) @ G

    # 1) f32 streamed path (single block), strict tolerance vs. reference math.
    out_f32 = jax.block_until_ready(mtlr_forward(x, weight, bias, G))
    assert out_f32.shape == (batch, num_time_bins + 1)
    assert out_f32.dtype == jnp.float32
    assert jnp.allclose(out_f32, ref, atol=1e-4, rtol=1e-4)

    # 2) bf16 streamed path: caller hands in bf16 x (no wrapper cast round trip),
    #    f32 accumulation + f32 bias add inside the kernel; looser tolerance.
    out_bf16 = jax.block_until_ready(
        mtlr_forward(x.astype(jnp.bfloat16), weight, bias, G))
    assert out_bf16.shape == (batch, num_time_bins + 1)
    assert jnp.allclose(out_bf16, ref, atol=2e-2, rtol=2e-2)

    # 3) Larger, non-tile-aligned batch to exercise the pipelined multi-block
    #    path (partial last block) with an explicit small tile override.
    big_batch = 600
    x_big = jax.random.normal(k_x2, (big_batch, in_features), dtype=jnp.float32)
    out_big = jax.block_until_ready(
        mtlr_forward(x_big, weight, bias, G, block_n=256))
    ref_big = (x_big @ weight + bias) @ G
    assert out_big.shape == (big_batch, num_time_bins + 1)
    assert jnp.allclose(out_big, ref_big, atol=1e-4, rtol=1e-4)

    # 4) Same big batch with the auto-derived (large, VMEM-budgeted) tile.
    out_big_auto = jax.block_until_ready(mtlr_forward(x_big, weight, bias, G))
    assert jnp.allclose(out_big_auto, ref_big, atol=1e-4, rtol=1e-4)

    print("KERNEL_OK")
</pallas_src>

<mosaic_0001>
module attributes {stable_mosaic.version = 11 : i64} {
  func.func @mtlr_kernel(%arg0: i32, %arg1: memref<4x32xf32, #tpu.memory_space<vmem>>, %arg2: memref<32x9xf32, #tpu.memory_space<vmem>>, %arg3: memref<1x9xf32, #tpu.memory_space<vmem>>, %arg4: memref<4x9xf32, #tpu.memory_space<vmem>>) attributes {dimension_semantics = [#tpu.dimension_semantics<parallel>], iteration_bounds = array<i64: 1>, scalar_prefetch = 0 : i64, scratch_operands = 0 : i64, tpu.core_type = #tpu.core_type<tc>, window_params = [{transform_indices = @transform_0, window_bounds = array<i64: 4, 32>}, {pipeline_mode = #tpu.pipeline_mode<synchronous>, transform_indices = @transform_1, window_bounds = array<i64: 32, 9>}, {pipeline_mode = #tpu.pipeline_mode<synchronous>, transform_indices = @transform_2, window_bounds = array<i64: 1, 9>}, {transform_indices = @transform_3, window_bounds = array<i64: 4, 9>}]} {
    %c0 = arith.constant 0 : index
    %c0_0 = arith.constant 0 : index
    %0 = vector.load %arg1[%c0, %c0_0] : memref<4x32xf32, #tpu.memory_space<vmem>>, vector<4x32xf32>
    %c0_1 = arith.constant 0 : index
    %c0_2 = arith.constant 0 : index
    %1 = vector.load %arg2[%c0_1, %c0_2] : memref<32x9xf32, #tpu.memory_space<vmem>>, vector<32x9xf32>
    %cst = arith.constant dense<0.000000e+00> : vector<4x9xf32>
    %2 = tpu.matmul %0, %1, %cst {dimension_numbers = #tpu.dot_dimension_numbers<[1], [0], [0], [1], [0, 0, 1, 1], [], []>} : vector<4x32xf32>, vector<32x9xf32>, vector<4x9xf32> -> vector<4x9xf32>
    %c0_3 = arith.constant 0 : index
    %c0_4 = arith.constant 0 : index
    %3 = vector.load %arg3[%c0_3, %c0_4] : memref<1x9xf32, #tpu.memory_space<vmem>>, vector<1x9xf32>
    %4 = vector.broadcast %3 : vector<1x9xf32> to vector<4x9xf32>
    %5 = arith.addf %2, %4 : vector<4x9xf32>
    %c0_5 = arith.constant 0 : index
    %c0_6 = arith.constant 0 : index
    %6 = vector.load %arg4[%c0_5, %c0_6] : memref<4x9xf32, #tpu.memory_space<vmem>>, vector<4x9xf32>
    tpu.vector_store %arg4[%c0_5, %c0_6], %5 {strides = array<i32>} : memref<4x9xf32, #tpu.memory_space<vmem>>, vector<4x9xf32>,
    return
  }
  func.func @transform_0(%arg0: i32) -> (i32, i32) {
    %c0_i32 = arith.constant 0 : i32
    %c0_i32_0 = arith.constant 0 : i32
    return %arg0, %c0_i32 : i32, i32
  }
  func.func @transform_1(%arg0: i32) -> (i32, i32) {
    %c0_i32 = arith.constant 0 : i32
    %c0_i32_0 = arith.constant 0 : i32
    %c0_i32_1 = arith.constant 0 : i32
    return %c0_i32, %c0_i32_0 : i32, i32
  }
  func.func @transform_2(%arg0: i32) -> (i32, i32) {
    %c0_i32 = arith.constant 0 : i32
    %c0_i32_0 = arith.constant 0 : i32
    %c0_i32_1 = arith.constant 0 : i32
    return %c0_i32, %c0_i32_0 : i32, i32
  }
  func.func @transform_3(%arg0: i32) -> (i32, i32) {
    %c0_i32 = arith.constant 0 : i32
    %c0_i32_0 = arith.constant 0 : i32
    return %arg0, %c0_i32 : i32, i32
  }
}

</mosaic_0001>

<llo_original>
// kernel: tpu_custom_call.1
$region0: #{tpu_custom_call.1}
  #allocation0 [shape = 'u32[]', space=smem, size = 0x4, offset = 0x4, fixed_abs, tag = 'smem constant byte address 0x4 - core index']
  #allocation1 [shape = 'u32[144,128]{1,0:T(1,128)}', space=vmem, size = 0x12000, scoped, tag = 'internal scratch']
  %s0 = inlined_call_operand.vmem [shape: f32[4,32], index: 0, kind: input, shape index: {}]
  %s1 = inlined_call_operand.vmem [shape: f32[32,9], index: 1, kind: input, shape index: {}]
  %s2 = inlined_call_operand.vmem [shape: f32[1,9], index: 2, kind: input, shape index: {}]
  %s3 = inlined_call_operand.hbm [shape: f32[4,9], index: 3, kind: output, shape index: {}]
  %s4 = sld [smem:[#allocation0]]
  $region22: #{tpu_custom_call.1} parent=0
    _
  %s6 = ssub.s32 1, %s4
  %s7 = scalar_select 0, %s6, %s4
  $region1: #{tpu_custom_call.1} parent=0
    #allocation2 [shape = 'u8[2048]{0}', space=vmem, size = 0x800, scoped, tag = 'output window, operand 0, single buffered']
    #allocation3 [shape = 's32[1]{0}', space=sflag, size = 0x4, scoped, tag = 'scoped memory for tpu_custom_call.1']
    %8 = vsyncpa [#allocation3], 0
    // Predicated region
    $region2: #{tpu_custom_call.1} parent=1 // pred_check
      _
    $region3: #{tpu_custom_call.1} parent=1 // pred_check_branch
      %10 = sbr.rel (0) target = $region5
    $region4: #{tpu_custom_call.1} parent=1 // pred_region
      _
    $region5: #{tpu_custom_call.1} parent=1 // pred_fallthru
      _
    // Predicated region
    $region6: #{tpu_custom_call.1} parent=1 // pred_check
      _
    $region7: #{tpu_custom_call.1} parent=1 // pred_check_branch
      %12 = sbr.rel (0) target = $region9
    $region8: #{tpu_custom_call.1} parent=1 // pred_region
      _
    $region9: #{tpu_custom_call.1} parent=1 // pred_fallthru
      _
    // Predicated region
    $region10: #{tpu_custom_call.1} parent=1 // pred_check
      _
    $region11: #{tpu_custom_call.1} parent=1 // pred_check_branch
      %14 = sbr.rel (0) target = $region13
    $region12: #{tpu_custom_call.1} parent=1 // pred_region
      _
    $region13: #{tpu_custom_call.1} parent=1 // pred_fallthru
      _
    %v15 = vld [vmem:[%s0] sm:$0xf]
    %v16 = vld [vmem:[%s1] sm:$0xff]
    %v17 = vld [vmem:[%s1 + $0x8] sm:$0xff]
    %v18 = vld [vmem:[%s1 + $0x10] sm:$0xff]
    %v19 = vld [vmem:[%s1 + $0x18] sm:$0xff]
    %v20 = vld [vmem:[%s2] sm:$0x1]
    %v22 = vlaneseq
    %v23 = vshrl.u32 %v22, 7
    %v24 = vsub.s32 0, %v23
    %v25 = vrot.slane %v20, %v24
    %vm27 = vcmask 261120
    %v29 = vsel %vm27, %v15, 0
    %31 = vmatprep.subr.mxu0 0.0
    %32 = vmatpush1.msra.mxu0 %v16
    %33 = vmatprep.subr.mxu0 0.0
    %34 = vmatpush1.msra.mxu0 %v17
    %35 = vmatprep.subr.mxu0 0.0
    %36 = vmatpush1.msra.mxu0 %v18
    %37 = vmatprep.subr.mxu0 0.0
    %38 = vmatpush1.msra.mxu0 %v19
    %39 = vmatprep.subr.mxu0 0.0
    %40 = vmatpush1.msra.mxu0 0.0
    %41 = vmatprep.subr.mxu0 0.0
    %42 = vmatpush1.msra.mxu0 0.0
    %43 = vmatprep.subr.mxu0 0.0
    %44 = vmatpush1.msra.mxu0 0.0
    %45 = vmatprep.subr.mxu0 0.0
    %46 = vmatpush1.msra.mxu0 0.0
    %47 = vmatprep.subr.mxu0 0.0
    %48 = vmatpush1.msra.mxu0 0.0
    %49 = vmatprep.subr.mxu0 0.0
    %50 = vmatpush1.msra.mxu0 0.0
    %51 = vmatprep.subr.mxu0 0.0
    %52 = vmatpush1.msra.mxu0 0.0
    %53 = vmatprep.subr.mxu0 0.0
    %54 = vmatpush1.msra.mxu0 0.0
    %55 = vmatprep.subr.mxu0 0.0
    %56 = vmatpush1.msra.mxu0 0.0
    %57 = vmatprep.subr.mxu0 0.0
    %58 = vmatpush1.msra.mxu0 0.0
    %59 = vmatprep.subr.mxu0 0.0
    %60 = vmatpush1.msra.mxu0 0.0
    %61 = vmatprep.subr.mxu0 0.0
    %62 = vmatpush1.msra.mxu0 0.0
    %63 = vmatprep.subr.mxu0 0.0
    %64 = vmatpush1.msra.mxu0 0.0
    %65 = vmatprep.subr.mxu0 0.0
    %66 = vmatpush1.msra.mxu0 0.0
    %67 = vmatprep.subr.mxu0 0.0
    %68 = vmatpush1.msra.mxu0 0.0
    %69 = vmatprep.subr.mxu0 0.0
    %70 = vmatpush1.msra.mxu0 0.0
    %71 = vmatprep.subr.mxu0 0.0
    %72 = vmatpush1.msra.mxu0 0.0
    %73 = vmatprep.subr.mxu0 0.0
    %74 = vmatpush1.msra.mxu0 0.0
    %75 = vmatprep.subr.mxu0 0.0
    %76 = vmatpush1.msra.mxu0 0.0
    %77 = vmatprep.subr.mxu0 0.0
    %78 = vmatpush1.msra.mxu0 0.0
    %79 = vmatprep.subr.mxu0 0.0
    %80 = vmatpush1.msra.mxu0 0.0
    %81 = vmatprep.subr.mxu0 0.0
    %82 = vmatpush1.msra.mxu0 0.0
    %83 = vmatprep.subr.mxu0 0.0
    %84 = vmatpush1.msra.mxu0 0.0
    %85 = vmatprep.subr.mxu0 0.0
    %86 = vmatpush1.msra.mxu0 0.0
    %87 = vmatprep.subr.mxu0 0.0
    %88 = vmatpush1.msra.mxu0 0.0
    %89 = vmatprep.subr.mxu0 0.0
    %90 = vmatpush1.msra.mxu0 0.0
    %91 = vmatprep.subr.mxu0 0.0
    %92 = vmatpush1.msra.mxu0 0.0
    %93 = vmatprep.subr.mxu0 0.0
    %94 = vmatpush1.msra.mxu0 0.0
    %95 = vmatprep.mubr.f32.mxu0 0.0
    %96 = vmatmul.mubr.f32.gmra.mrb[0].mxu0 %v29
    %v97 = vpop.f32.mrb[0].mxu0
    %v98 = vadd.f32 %v25, %v97
    %v99 = vpop.f32.mrb[0].mxu0
    %100 = vdwg.mxu0
    %vm101 = vcmask 68608
    %102 = vst.msk [vmem:[#allocation2] sm:$0xf] %vm101, %v98
    // Predicated region
    $region14: #{tpu_custom_call.1} parent=1 // pred_check
      _
    $region15: #{tpu_custom_call.1} parent=1 // pred_check_branch
      %104 = sbr.rel (0) target = $region17
    $region16: #{tpu_custom_call.1} parent=1 // pred_region
      %s106 = ssub.s32 64, 64
      %107 = vsyncadd [#allocation3], %s106
      %s109 = sshll.u32 [#allocation2], 4
      %s110 = int_to_ptr.vmem [resolvable:$true] %s109
      %112 = dma.vmem_to_hbm [thread:$0]  %s110, 64, %s3, [#allocation3]
    $region17: #{tpu_custom_call.1} parent=1 // pred_fallthru
      _
    // Predicated region
    $region18: #{tpu_custom_call.1} parent=1 // pred_check
      _
    $region19: #{tpu_custom_call.1} parent=1 // pred_check_branch
      %114 = sbr.rel (0) target = $region21
    $region20: #{tpu_custom_call.1} parent=1 // pred_region
      %115 = dma.done [#allocation3], 64
    $region21: #{tpu_custom_call.1} parent=1 // pred_fallthru
      _
    %116 = vsyncpa [#allocation3], 1

</llo_original>
